<compile_context>
chip_gen: v7x
topology: tpu7x:2x2x1
jax: 0.10.0
libtpu: 0.0.40
codegen_flags: <defaults>
</compile_context>

<pallas_src>
import jax
import jax.numpy as jnp
import numpy as np
from jax.experimental import pallas as pl
from jax.experimental.pallas import tpu as pltpu


def _cdiv(a, b):
    return -(-a // b)


def _round_up(a, b):
    return _cdiv(a, b) * b


def mesh_pe_kernel(pos_ref, x_ref, out_ref):
    # pos_ref : (rt, L)      lane-folded template-vertex slab, zeros in feature lanes
    # x_ref   : (bt, L)      lane-folded feature slab, zeros in positional lanes
    # out_ref : (bt, rt, L)  lane-dense output tile (L is a multiple of 128)
    # The two slabs occupy disjoint lanes, so a broadcast add IS the concat:
    # a single full-width unmasked store, no intermediate materialization.
    # (Note: -0.0 inputs come out as +0.0; torch.cat would keep the sign bit.)
    out_ref[...] = x_ref[...][:, None, :] + pos_ref[...][None, :, :]


def _vmem_budget_bytes():
    """Per-output-tile budget, generation aware (v7x has half the VMEM of v6e)."""
    try:
        cap = pltpu.get_tpu_info().vmem_capacity_bytes
    except Exception:
        cap = 64 << 20  # most conservative (v7x per-TensorCore)
    # Double-buffered out tile + pos/x tiles must fit with plenty of headroom
    # under the 32 MiB scoped limit requested below, on every generation.
    return max(1 << 20, min(cap // 16, 4 << 20))


def _choose_tiles(B, R, L, itemsize, sub):
    """Pick (bt, rt): sublane-aligned, VMEM-safe, several steps along R."""
    bt = B if B <= sub else sub                      # bt % sub == 0 or bt == B
    budget = _vmem_budget_bytes()
    rt = (budget // (2 * bt * L * itemsize)) // sub * sub   # 2x = double buffering
    rt = max(sub, min(rt, R))
    # Keep several grid steps along the (large) vertex-row axis so input DMA,
    # compute and writeback overlap and the v7x megacore has work to split.
    if R >= 4 * sub:
        rt = min(rt, max(sub, _round_up(_cdiv(R, 4), sub)))
    elif R >= 2 * sub:
        rt = min(rt, max(sub, _round_up(_cdiv(R, 2), sub)))
    return bt, rt


class MeshPositionalEncoding:
    """JAX/Pallas port of the PyTorch module (template vertices passed in-memory)."""

    C = 3  # xyz coordinates per vertex

    def __init__(self, batch_size, template_verts):
        # TODO(synk): the PyTorch module loads the SMPL .obj/.csv from disk via
        # trimesh; file I/O stays host-side, the kernel takes the (V, 3) array.
        self.batch_size = int(batch_size)
        self.template_verts = jnp.asarray(template_verts, jnp.float32)  # (V, 3)
        self.num_vertices = int(self.template_verts.shape[0])
        self._fwd_cache = {}   # (feat_dim, dtype) -> (jitted fwd, pos_slab)

    def _build(self, feat_dim, dtype):
        B, C, V = self.batch_size, self.C, self.num_vertices
        F = int(feat_dim)
        itemsize = jnp.dtype(dtype).itemsize
        sub = max(8, 32 // itemsize)     # sublane multiple: f32 8, bf16 16, int8 32
        width = C + F

        # Lane folding: pad channel width to a divisor of 128 and fold `fold`
        # vertices into one 128-lane row -> unmasked full-width stores.
        if width <= 128:
            W_pad = 1
            while W_pad < width:
                W_pad *= 2
            fold = 128 // W_pad
        else:
            W_pad = _round_up(width, 128)
            fold = 1
        L = fold * W_pad

        # Pad the vertex count so the folded row count R is sublane aligned
        # (e.g. SMPL V=6890 -> V_pad=6912 for width 16), instead of disabling
        # the folded fast path.
        V_pad = _round_up(V, fold * sub)
        R = V_pad // fold

        # Template slab built once per (F, dtype): (V_pad, W_pad) with zeroed
        # feature/pad lanes, folded to (R, L) by a free contiguous reshape.
        pos = jnp.zeros((V_pad, W_pad), dtype).at[:V, :C].set(
            self.template_verts.astype(dtype))
        pos_slab = pos.reshape(R, L)

        bt, rt = _choose_tiles(B, R, L, itemsize, sub)
        nr, nb = _cdiv(R, rt), _cdiv(B, bt)

        cost = pl.CostEstimate(
            flops=B * R * L,
            transcendentals=0,
            bytes_accessed=(R * L + B * L + B * R * L) * itemsize,
        )

        call = pl.pallas_call(
            mesh_pe_kernel,
            out_shape=jax.ShapeDtypeStruct((B, R, L), dtype),
            # Vertex-row axis outermost: each pos-slab tile is DMA'd once, and
            # the big axis is what gets sharded across TensorCores.
            grid=(nr, nb),
            in_specs=[
                pl.BlockSpec((rt, L), lambda r, b: (r, 0)),
                pl.BlockSpec((bt, L), lambda r, b: (b, 0)),
            ],
            out_specs=pl.BlockSpec((bt, rt, L), lambda r, b: (b, r, 0)),
            compiler_params=pltpu.CompilerParams(
                dimension_semantics=("parallel", "parallel"),
                vmem_limit_bytes=32 * 1024 * 1024,
            ),
            cost_estimate=cost,
        )

        def fwd(pos_slab, x):
            # Tiny per-call prep (B*L elements); jitted together with the
            # pallas_call, so it does not cost a separate dispatch.
            x_pad = jnp.pad(x.reshape(B, F).astype(dtype),
                            ((0, 0), (C, W_pad - width)))     # (B, W_pad)
            x_slab = jnp.tile(x_pad, (1, fold))               # (B, L)
            out = call(pos_slab, x_slab)                      # (B, R, L)
            out = out.reshape(B, V_pad, W_pad)                # free contiguous view
            # Strip padding to the exact PyTorch layout (B, V, 3 + F).
            # TODO(synk): a fused consumer should read the padded (B, V_pad, W_pad)
            # slab directly (or build this concat inside its own LHS BlockSpec)
            # so the (B, V, 3+F) tensor never round-trips HBM at all.
            return out[:, :V, :width]

        return jax.jit(fwd), pos_slab

    def __call__(self, x):
        B, one, F = x.shape
        assert one == 1 and B == self.batch_size
        key = (int(F), jnp.dtype(x.dtype).name)
        if key not in self._fwd_cache:
            self._fwd_cache[key] = self._build(F, x.dtype)
        fwd, pos_slab = self._fwd_cache[key]
        return fwd(pos_slab, x)


if __name__ == "__main__":
    batch_size = 2
    num_vertices = 100      # NOT a multiple of the lane fold -> exercises V padding
    feat_dim = 13           # 3 + 13 = 16 lanes -> folds 8 vertices into 128 lanes

    key = jax.random.PRNGKey(0)
    k_verts, k_x, k_x2 = jax.random.split(key, 3)

    # Synthetic template-mesh vertices (no file I/O), mirroring the .obj load.
    template_verts = jax.random.normal(k_verts, (num_vertices, 3), dtype=jnp.float32)
    x = jax.random.normal(k_x, (batch_size, 1, feat_dim), dtype=jnp.float32)

    module = MeshPositionalEncoding(batch_size, template_verts)
    out = jax.block_until_ready(module(x))

    pos_mat = jnp.broadcast_to(template_verts[None], (batch_size, num_vertices, 3))
    ref = jnp.concatenate(
        [pos_mat, jnp.broadcast_to(x, (batch_size, num_vertices, feat_dim))], axis=2)
    assert out.shape == (batch_size, num_vertices, 3 + feat_dim)
    np.testing.assert_allclose(np.asarray(out), np.asarray(ref), rtol=0, atol=0)

    # Channel width that does not divide 128 (3 + 10 = 13): padded to 16 lanes
    # inside the kernel, sliced back to 13 in the wrapper.
    feat_dim2 = 10
    x2 = jax.random.normal(k_x2, (batch_size, 1, feat_dim2), dtype=jnp.float32)
    out2 = jax.block_until_ready(module(x2))
    ref2 = jnp.concatenate(
        [pos_mat, jnp.broadcast_to(x2, (batch_size, num_vertices, feat_dim2))],
        axis=2)
    assert out2.shape == (batch_size, num_vertices, 3 + feat_dim2)
    np.testing.assert_allclose(np.asarray(out2), np.asarray(ref2), rtol=0, atol=0)

    print("KERNEL_OK")
</pallas_src>

<mosaic_0001>
module attributes {stable_mosaic.version = 11 : i64} {
  func.func @mesh_pe_kernel(%arg0: i32, %arg1: i32, %arg2: memref<8x128xf32, #tpu.memory_space<vmem>>, %arg3: memref<2x128xf32, #tpu.memory_space<vmem>>, %arg4: memref<2x8x128xf32, #tpu.memory_space<vmem>>) attributes {dimension_semantics = [#tpu.dimension_semantics<parallel>, #tpu.dimension_semantics<parallel>], iteration_bounds = array<i64: 2, 1>, scalar_prefetch = 0 : i64, scratch_operands = 0 : i64, tpu.core_type = #tpu.core_type<tc>, window_params = [{transform_indices = @transform_0, window_bounds = array<i64: 8, 128>}, {transform_indices = @transform_1, window_bounds = array<i64: 2, 128>}, {transform_indices = @transform_2, window_bounds = array<i64: 2, 8, 128>}]} {
    %c0 = arith.constant 0 : index
    %c0_0 = arith.constant 0 : index
    %0 = vector.load %arg3[%c0, %c0_0] : memref<2x128xf32, #tpu.memory_space<vmem>>, vector<2x128xf32>
    %1 = vector.shape_cast %0 : vector<2x128xf32> to vector<2x1x128xf32>
    %c0_1 = arith.constant 0 : index
    %c0_2 = arith.constant 0 : index
    %2 = vector.load %arg2[%c0_1, %c0_2] : memref<8x128xf32, #tpu.memory_space<vmem>>, vector<8x128xf32>
    %3 = vector.shape_cast %2 : vector<8x128xf32> to vector<1x8x128xf32>
    %4 = vector.broadcast %1 : vector<2x1x128xf32> to vector<2x8x128xf32>
    %5 = vector.broadcast %3 : vector<1x8x128xf32> to vector<2x8x128xf32>
    %6 = arith.addf %4, %5 : vector<2x8x128xf32>
    %c0_3 = arith.constant 0 : index
    %c0_4 = arith.constant 0 : index
    %c0_5 = arith.constant 0 : index
    %7 = vector.load %arg4[%c0_3, %c0_4, %c0_5] : memref<2x8x128xf32, #tpu.memory_space<vmem>>, vector<2x8x128xf32>
    tpu.vector_store %arg4[%c0_3, %c0_4, %c0_5], %6 {strides = array<i32>} : memref<2x8x128xf32, #tpu.memory_space<vmem>>, vector<2x8x128xf32>,
    return
  }
  func.func @transform_0(%arg0: i32, %arg1: i32) -> (i32, i32) {
    %c0_i32 = arith.constant 0 : i32
    %c0_i32_0 = arith.constant 0 : i32
    return %arg0, %c0_i32 : i32, i32
  }
  func.func @transform_1(%arg0: i32, %arg1: i32) -> (i32, i32) {
    %c0_i32 = arith.constant 0 : i32
    %c0_i32_0 = arith.constant 0 : i32
    return %arg1, %c0_i32 : i32, i32
  }
  func.func @transform_2(%arg0: i32, %arg1: i32) -> (i32, i32, i32) {
    %c0_i32 = arith.constant 0 : i32
    %c0_i32_0 = arith.constant 0 : i32
    return %arg1, %arg0, %c0_i32 : i32, i32, i32
  }
}

</mosaic_0001>

<llo_original>
// kernel: tile.9
$region0: #{tile.9}
  %s0 = inlined_call_operand.vmem [shape: f32[2,8,16], index: 0, kind: input, shape index: {}]
  %s1 = inlined_call_operand.vmem [shape: f32[2,128], index: 1, kind: output, shape index: {}]
  $region1: #{tile.9} parent=0
    #allocation0 [shape = 'u8[4096]{0}', space=vmem, size = 0x1000, scoped, tag = 'scoped mem for output reshape']
    %s2 = smov 3
    %v3 = vld [vmem:[%s0] ss:$8 sm:%s2]
    %vm4 = vcmask 130048
    %5 = vst.msk [vmem:[#allocation0] sm:$0x3] %vm4, %v3
    %s6 = scalar_lea.vmem %s0, 7
    %s7 = smov 3
    %v8 = vld [vmem:[%s6] ss:$8 sm:%s7]
    %9 = vrot.lane.b32.xlu0 %v8, 112
    %v10 = vpop.permute.xlu0 %9
    %vm11 = vcmask 1048448
    %12 = vst.msk [vmem:[#allocation0] sm:$0x3] %vm11, %v10
    %s13 = scalar_lea.vmem %s0, 6
    %s14 = smov 3
    %v15 = vld [vmem:[%s13] ss:$8 sm:%s14]
    %16 = vrot.lane.b32.xlu0 %v15, 96
    %v17 = vpop.permute.xlu0 %16
    %vm18 = vcmask 917248
    %19 = vst.msk [vmem:[#allocation0] sm:$0x3] %vm18, %v17
    %s20 = scalar_lea.vmem %s0, 5
    %s21 = smov 3
    %v22 = vld [vmem:[%s20] ss:$8 sm:%s21]
    %23 = vrot.lane.b32.xlu0 %v22, 80
    %v24 = vpop.permute.xlu0 %23
    %vm25 = vcmask 786048
    %26 = vst.msk [vmem:[#allocation0] sm:$0x3] %vm25, %v24
    %s27 = scalar_lea.vmem %s0, 4
    %s28 = smov 3
    %v29 = vld [vmem:[%s27] ss:$8 sm:%s28]
    %30 = vrot.lane.b32.xlu0 %v29, 64
    %v31 = vpop.permute.xlu0 %30
    %vm32 = vcmask 654848
    %33 = vst.msk [vmem:[#allocation0] sm:$0x3] %vm32, %v31
    %s34 = scalar_lea.vmem %s0, 3
    %s35 = smov 3
    %v36 = vld [vmem:[%s34] ss:$8 sm:%s35]
    %37 = vrot.lane.b32.xlu0 %v36, 48
    %v38 = vpop.permute.xlu0 %37
    %vm39 = vcmask 523648
    %40 = vst.msk [vmem:[#allocation0] sm:$0x3] %vm39, %v38
    %s41 = scalar_lea.vmem %s0, 2
    %s42 = smov 3
    %v43 = vld [vmem:[%s41] ss:$8 sm:%s42]
    %44 = vrot.lane.b32.xlu0 %v43, 32
    %v45 = vpop.permute.xlu0 %44
    %vm46 = vcmask 392448
    %47 = vst.msk [vmem:[#allocation0] sm:$0x3] %vm46, %v45
    %s48 = scalar_lea.vmem %s0, 1
    %s49 = smov 3
    %v50 = vld [vmem:[%s48] ss:$8 sm:%s49]
    %51 = vrot.lane.b32.xlu0 %v50, 16
    %v52 = vpop.permute.xlu0 %51
    %vm53 = vcmask 261248
    %54 = vst.msk [vmem:[#allocation0] sm:$0x3] %vm53, %v52
    %s56 = sshllo.u32 0, 2
    %v58 = vld [vmem:[#allocation0] sm:%s56]
    %s59 = sshllo.u32 0, 2
    %60 = vst [vmem:[%s1] sm:%s59] %v58

// kernel: fwd.1
$region0: #{fwd.1}
  #allocation0 [shape = 'u32[]', space=smem, size = 0x4, offset = 0x4, fixed_abs, tag = 'smem constant byte address 0x4 - core index']
  #allocation1 [shape = 'u32[144,128]{1,0:T(1,128)}', space=vmem, size = 0x12000, scoped, tag = 'internal scratch']
  %s0 = inlined_call_operand.vmem [shape: f32[16,128], index: 0, kind: input, shape index: {}]
  %s1 = inlined_call_operand.vmem [shape: f32[2,128], index: 1, kind: input, shape index: {}]
  %s2 = inlined_call_operand.vmem [shape: f32[2,16,128], index: 2, kind: output, shape index: {}]
  %s3 = sld [smem:[#allocation0]]
  $region75: #{fwd.1} parent=0
    _
  %s5 = ssub.s32 1, %s3
  %s6 = scalar_select 0, %s5, %s3
  $region1: #{fwd.1} parent=0
    #allocation2 [shape = 'u8[16384]{0}', space=vmem, size = 0x4000, scoped, tag = 'output window, operand 0']
    loop: start=0, step=1, limit=4
    $region2: #{fwd.1} parent=1 // loop_pre_header
      _
    $region3: #{fwd.1} parent=1 // loop_header
      %s8 = sphi 0, %s12
      %p9 = scmp.ge.s32.totalorder %s8, 4
      %s15 = sphi 0, %s27
      %s16 = sphi 0, %s23
      %s17 = sphi 0, %s15
      %s18 = sphi 0, %s16
      %s19 = sphi 0, %s17
      %s20 = sphi 0, %s18
      %s30 = sphi 0, %s32
      %s33 = sphi 0, %s30
      %s34 = sphi 0, %s33
      %s50 = sphi 0, %s34
      %s56 = sphi 0, %s58
      %s59 = sphi 0, %s56
      %s60 = sphi 0, %s59
      %s76 = sphi 0, %s60
      %s84 = sphi 0, %s86
      %s87 = sphi 0, %s84
      %s88 = sphi 0, %s87
      %s104 = sphi 0, %s88
    $region4: #{fwd.1} parent=1 // loop_header_branch
      %11 = sbr.rel (%p9) target = $region8
    $region5: #{fwd.1} parent=1 // loop_body
      %s13 = ssub.s32 %s8, 1
      %s14 = ssub.s32 %s8, 2
      %s21 = sadd.s32 1, %s16
      %p22 = scmp.ge.s32.totalorder %s21, 1
      %s23 = scalar_select %p22, 0, %s21
      %s24 = sadd.s32 1, %s15
      %s25 = scalar_select %p22, %s24, %s15
      %p26 = scmp.ge.s32.totalorder %s25, 2
      %s27 = scalar_select %p26, 0, %s25
      %s28 = ssub.s32 %s15, %s27
      %p29 = scmp.eq.s32.totalorder %s28, 0
      %s31 = sadd.s32 %s30, 1
      %s32 = scalar_select %p29, %s30, %s31
      %p35 = pneg %p29
      %p36 = scmp.eq.s32.totalorder %s8, 1
      %p37 = por %p35, %p36
      %p38 = scmp.ne.s32.totalorder %s30, %s33
      %p39 = scmp.eq.s32.totalorder %s8, 0
      %p40 = por %p38, %p39
      %p41 = scmp.ne.s32.totalorder %s30, %s33
      %p42 = scmp.eq.s32.totalorder %s13, 1
      %p43 = por %p41, %p42
      %p44 = scmp.ne.s32.totalorder %s33, %s34
      %p45 = scmp.eq.s32.totalorder %s13, 0
      %p46 = por %p44, %p45
      %p47 = scmp.ne.s32.totalorder %s33, %s34
      %p48 = scmp.eq.s32.totalorder %s14, 1
      %p49 = por %p47, %p48
      %p51 = scmp.ne.s32.totalorder %s34, %s50
      %p52 = scmp.eq.s32.totalorder %s14, 0
      %p53 = por %p51, %p52
      %s54 = ssub.s32 %s16, %s23
      %p55 = scmp.eq.s32.totalorder %s54, 0
      %s57 = sadd.s32 %s56, 1
      %s58 = scalar_select %p55, %s56, %s57
      %p61 = pneg %p55
      %p62 = scmp.eq.s32.totalorder %s8, 1
      %p63 = por %p61, %p62
      %p64 = scmp.ne.s32.totalorder %s56, %s59
      %p65 = scmp.eq.s32.totalorder %s8, 0
      %p66 = por %p64, %p65
      %p67 = scmp.ne.s32.totalorder %s56, %s59
      %p68 = scmp.eq.s32.totalorder %s13, 1
      %p69 = por %p67, %p68
      %p70 = scmp.ne.s32.totalorder %s59, %s60
      %p71 = scmp.eq.s32.totalorder %s13, 0
      %p72 = por %p70, %p71
      %p73 = scmp.ne.s32.totalorder %s59, %s60
      %p74 = scmp.eq.s32.totalorder %s14, 1
      %p75 = por %p73, %p74
      %p77 = scmp.ne.s32.totalorder %s60, %s76
      %p78 = scmp.eq.s32.totalorder %s14, 0
      %p79 = por %p77, %p78
      %s80 = ssub.s32 %s16, %s23
      %s81 = ssub.s32 %s15, %s27
      %s82 = sor.u32 %s80, %s81
      %p83 = scmp.eq.s32.totalorder %s82, 0
      %s85 = sadd.s32 %s84, 1
      %s86 = scalar_select %p83, %s84, %s85
      %p89 = pneg %p83
      %p90 = scmp.eq.s32.totalorder %s8, 1
      %p91 = por %p89, %p90
      %p92 = scmp.ne.s32.totalorder %s84, %s87
      %p93 = scmp.eq.s32.totalorder %s8, 0
      %p94 = por %p92, %p93
      %p95 = scmp.ne.s32.totalorder %s84, %s87
      %p96 = scmp.eq.s32.totalorder %s13, 1
      %p97 = por %p95, %p96
      %p98 = scmp.ne.s32.totalorder %s87, %s88
      %p99 = scmp.eq.s32.totalorder %s13, 0
      %p100 = por %p98, %p99
      %p101 = scmp.ne.s32.totalorder %s87, %s88
      %p102 = scmp.eq.s32.totalorder %s14, 1
      %p103 = por %p101, %p102
      %p105 = scmp.ne.s32.totalorder %s88, %s104
      %p106 = scmp.eq.s32.totalorder %s14, 0
      %p107 = por %p105, %p106
      %p108 = scmp.le.s32.totalorder 1, %s8
      %p109 = scmp.lt.s32.totalorder %s8, 3
      %p110 = pnand %p108, %p109
      %p111 = pneg %p110
      // Predicated region
      $region9: #{fwd.1} parent=5 // pred_check
        _
      $region10: #{fwd.1} parent=5 // pred_check_branch
        %113 = sbr.rel (%p110) target = $region12
      $region11: #{fwd.1} parent=5 // pred_region
        %s114 = ssub.s32 %s8, 1
        // Predicated region
        $region13: #{fwd.1} parent=11 // pred_check
          %p115 = pneg %p72
        $region14: #{fwd.1} parent=11 // pred_check_branch
          %117 = sbr.rel (%p115) target = $region16
        $region15: #{fwd.1} parent=11 // pred_region
          %p118 = scmp.lt.s32.totalorder %s18, 0
          %s119 = scalar_select %p118, %s18, 0
          %s120 = smul.addr %s119, 2
          %s121 = scalar_lea.vmem %s1, %s120
        $region16: #{fwd.1} parent=11 // pred_fallthru
          _
      $region12: #{fwd.1} parent=5 // pred_fallthru
        _
      %p122 = scmp.lt.s32.totalorder %s8, 2
      // Predicated region
      $region17: #{fwd.1} parent=5 // pred_check
        %p123 = pneg %p122
      $region18: #{fwd.1} parent=5 // pred_check_branch
        %125 = sbr.rel (%p123) target = $region20
      $region19: #{fwd.1} parent=5 // pred_region
        // Predicated region
        $region21: #{fwd.1} parent=19 // pred_check
          %p126 = pneg %p40
        $region22: #{fwd.1} parent=19 // pred_check_branch
          %128 = sbr.rel (%p126) target = $region24
        $region23: #{fwd.1} parent=19 // pred_region
          %p129 = scmp.lt.s32.totalorder %s15, 1
          %s130 = scalar_select %p129, %s15, 1
          %s131 = smul.addr %s130, 8
          %s132 = scalar_lea.vmem %s0, %s131
        $region24: #{fwd.1} parent=19 // pred_fallthru
          _
      $region20: #{fwd.1} parent=5 // pred_fallthru
        _
      %p133 = scmp.le.s32.totalorder 1, %s8
      %p134 = scmp.lt.s32.totalorder %s8, 3
      %p135 = pnand %p133, %p134
      %p136 = pneg %p135
      // Predicated region
      $region25: #{fwd.1} parent=5 // pred_check
        _
      $region26: #{fwd.1} parent=5 // pred_check_branch
        %138 = sbr.rel (%p135) target = $region28
      $region27: #{fwd.1} parent=5 // pred_region
        %s139 = ssub.s32 %s8, 1
        %p140 = scmp.lt.s32.totalorder %s17, 1
        %s141 = scalar_select %p140, %s17, 1
        %s142 = smul.addr %s141, 8
        %s143 = scalar_lea.vmem %s0, %s142
        %p144 = pneg %p46
        %p145 = pneg %p43
        %p146 = scmp.lt.s32.totalorder %s18, 0
        %s147 = scalar_select %p146, %s18, 0
        %s148 = smul.addr %s147, 2
        %s149 = scalar_lea.vmem %s1, %s148
        %p150 = pneg %p72
        %p151 = pneg %p69
        %p152 = pneg %p100
        %p153 = pneg %p97
        %s154 = sand.u32 %s87, 1
        %s155 = sand.u32 %s87, 1
        %s156 = smul.addr %s155, 16
        %s157 = scalar_lea.vmem [#allocation2], %s156
        %p158 = scmp.lt.s32.totalorder %s17, 1
        %s159 = scalar_select %p158, %s17, 1
        %s160 = smul.addr %s159, 8
        %s161 = scalar_lea.vmem %s0, %s160
        %p162 = scmp.lt.s32.totalorder %s18, 0
        %s163 = scalar_select %p162, %s18, 0
        %s164 = smul.addr %s163, 2
        %s165 = scalar_lea.vmem %s1, %s164
        %s166 = smul.u32 2, %s18
        %v167 = vld [vmem:[%s165] sm:$0x3]
        %v170 = vunpack.c.l.s4 1966171168
        %v171 = vunpack.c.0.s8 %v170
        %v172 = vlaneseq
        %v173 = vshrl.u32 %v172, 7
        %v174 = vsub.s32 %v171, %v173
        %v175 = vrot.slane %v167, %v174
        %v176 = vcombine.high %v175, %v175
        %v178 = vunpack.c.l.s4 1966171168
        %v179 = vunpack.c.0.s8 %v178
        %v180 = vlaneseq
        %v181 = vshrl.u32 %v180, 7
        %v182 = vsub.s32 %v179, %v181
        %v183 = vrot.slane %v175, %v182
        %v185 = vunpack.c.l.s4 1966171168
        %v186 = vunpack.c.0.s8 %v185
        %v187 = vlaneseq
        %v188 = vshrl.u32 %v187, 7
        %v189 = vsub.s32 %v186, %v188
        %v190 = vrot.slane %v176, %v189
        %v191 = vld [vmem:[%s161] sm:$0xff]
        %v192 = vlaneseq
        %v193 = vshrl.u32 %v192, 7
        %v194 = vsub.s32 0, %v193
        %v195 = vrot.slane %v183, %v194
        %v196 = vlaneseq
        %v197 = vshrl.u32 %v196, 7
        %v198 = vsub.s32 0, %v197
        %v199 = vrot.slane %v190, %v198
        %v202 = vadd.f32 %v195, %v191
        %v203 = vadd.f32 %v199, %v191
        %204 = vst [vmem:[%s157] sm:$0xff] %v202
        %205 = vst [vmem:[%s157 + $0x8] sm:$0xff] %v203
        %s206 = sand.u32 %s87, 1
        %s207 = sand.u32 %s87, 1
        %s208 = smul.addr %s207, 16
        %s209 = scalar_lea.vmem [#allocation2], %s208
        // Predicated region
        $region29: #{fwd.1} parent=27 // pred_check
          %p210 = pneg %p97
        $region30: #{fwd.1} parent=27 // pred_check_branch
          %212 = sbr.rel (%p210) target = $region32
        $region31: #{fwd.1} parent=27 // pred_region
          %s213 = smul.u32 2, %s18
          %s214 = smul.addr %s213, 2
          %s215 = sadd.s32 %s17, %s214
          %s216 = smul.addr %s215, 8
          %s217 = scalar_lea.vmem %s2, %s216
          // Predicated region
          $region33: #{fwd.1} parent=31 // pred_check
            _
          $region34: #{fwd.1} parent=31 // pred_check_branch
            %219 = sbr.rel (0) target = $region36
          $region35: #{fwd.1} parent=31 // pred_region
            // Predicated region
            $region37: #{fwd.1} parent=35 // pred_check
              _
            $region38: #{fwd.1} parent=35 // pred_check_branch
              %221 = sbr.rel (0) target = $region40
            $region39: #{fwd.1} parent=35 // pred_region
              // Predicated region
              $region52: #{fwd.1} parent=39 // pred_check
                _
              $region53: #{fwd.1} parent=39 // pred_check_branch
                %238 = sbr.rel (0) target = $region55
              $region54: #{fwd.1} parent=39 // pred_region
                loop: start=0, step=1, limit=1
                $region56: #{fwd.1} parent=54 // loop_pre_header
                  _
                $region57: #{fwd.1} parent=54 // loop_header
                  %s240 = sphi 0, %s244
                  %p241 = scmp.ge.s32.totalorder %s240, 1
                  %s245 = sphi %s209, %s209
                  %s246 = sphi %s217, %s217
                $region58: #{fwd.1} parent=54 // loop_header_branch
                  %243 = sbr.rel (%p241) target = $region62
                $region59: #{fwd.1} parent=54 // loop_body
                  %v247 = vld [vmem:[%s245] sm:$0xff]
                  %248 = vst [vmem:[%s246] sm:$0xff] %v247
                  %v249 = vld [vmem:[%s245 + $0x8] sm:$0xff]
                  %250 = vst [vmem:[%s246 + $0x10] sm:$0xff] %v249
                $region60: #{fwd.1} parent=54 // loop_footer
                  %s244 = sadd.s32 1, %s240
                $region61: #{fwd.1} parent=54 // loop_footer_branch
                  %239 = sbr.rel target = $region57
                $region62: #{fwd.1} parent=54 // loop_exit
                  _
              $region55: #{fwd.1} parent=39 // pred_fallthru
                _
              // Predicated region
              $region63: #{fwd.1} parent=39 // pred_check
                _
              $region64: #{fwd.1} parent=39 // pred_check_branch
                %252 = sbr.rel target = $region66
              $region65: #{fwd.1} parent=39 // pred_region
                _
              $region66: #{fwd.1} parent=39 // pred_fallthru
                _
            $region40: #{fwd.1} parent=35 // pred_fallthru
              _
            // Predicated region
            $region41: #{fwd.1} parent=35 // pred_check
              _
            $region42: #{fwd.1} parent=35 // pred_check_branch
              %223 = sbr.rel target = $region44
            $region43: #{fwd.1} parent=35 // pred_region
              loop: start=0, step=1, limit=1
              $region45: #{fwd.1} parent=43 // loop_pre_header
                _
              $region46: #{fwd.1} parent=43 // loop_header
                %s226 = sphi 0, %s230
                %p227 = scmp.ge.s32.totalorder %s226, 1
                %s231 = sphi %s209, %s209
                %s232 = sphi %s217, %s217
              $region47: #{fwd.1} parent=43 // loop_header_branch
                %229 = sbr.rel (%p227) target = $region51
              $region48: #{fwd.1} parent=43 // loop_body
                %v233 = vld [vmem:[%s231] sm:$0xff]
                %234 = vst [vmem:[%s232] sm:$0xff] %v233
                %v235 = vld [vmem:[%s231 + $0x8] sm:$0xff]
                %236 = vst [vmem:[%s232 + $0x10] sm:$0xff] %v235
              $region49: #{fwd.1} parent=43 // loop_footer
                %s230 = sadd.s32 1, %s226
              $region50: #{fwd.1} parent=43 // loop_footer_branch
                %225 = sbr.rel target = $region46
              $region51: #{fwd.1} parent=43 // loop_exit
                _
            $region44: #{fwd.1} parent=35 // pred_fallthru
              _
          $region36: #{fwd.1} parent=31 // pred_fallthru
            _
          %253 = vnop
        $region32: #{fwd.1} parent=27 // pred_fallthru
          _
      $region28: #{fwd.1} parent=5 // pred_fallthru
        _
      %p254 = scmp.le.s32.totalorder 2, %s8
      // Predicated region
      $region67: #{fwd.1} parent=5 // pred_check
        %p255 = pneg %p254
      $region68: #{fwd.1} parent=5 // pred_check_branch
        %257 = sbr.rel (%p255) target = $region70
      $region69: #{fwd.1} parent=5 // pred_region
        %s258 = ssub.s32 %s8, 2
        // Predicated region
        $region71: #{fwd.1} parent=69 // pred_check
          %p259 = pneg %p103
        $region72: #{fwd.1} parent=69 // pred_check_branch
          %261 = sbr.rel (%p259) target = $region74
        $region73: #{fwd.1} parent=69 // pred_region
          %s262 = sand.u32 %s88, 1
          %s263 = sand.u32 %s88, 1
          %s264 = smul.addr %s263, 16
          %s265 = scalar_lea.vmem [#allocation2], %s264
        $region74: #{fwd.1} parent=69 // pred_fallthru
          _
      $region70: #{fwd.1} parent=5 // pred_fallthru
        _
    $region6: #{fwd.1} parent=1 // loop_footer
      %s12 = sadd.s32 1, %s8
    $region7: #{fwd.1} parent=1 // loop_footer_branch
      %7 = sbr.rel target = $region3
    $region8: #{fwd.1} parent=1 // loop_exit
      _

</llo_original>
